<compile_context>
chip_gen: v5e
topology: v5e:2x2
jax: 0.10.0
libtpu: 0.0.40
codegen_flags: <defaults>
</compile_context>

<pallas_src>
import functools

import jax
import jax.numpy as jnp
from jax import lax
from jax.experimental import pallas as pl
from jax.experimental.pallas import tpu as pltpu


def _rmsnorm_kernel(x_ref, g_ref, o_ref, *, eps: float):
    # x_ref: (TOK_BLK, D) block of the input
    # g_ref: (1, D) gain (broadcast over rows)
    # o_ref: (TOK_BLK, D) output block
    x = x_ref[...].astype(jnp.float32)
    g = g_ref[...].astype(jnp.float32)
    ms = jnp.mean(x * x, axis=-1, keepdims=True)   # XLU lane-reduce -> (TOK_BLK, 1)
    inv_rms = lax.rsqrt(ms + eps)                  # EUP slot
    o_ref[...] = (x * inv_rms * g).astype(o_ref.dtype)
    # NOTE: in a partial last block the padded rows may produce inf/NaN here;
    # Pallas masks the out-of-bounds writeback so the visible output is correct.


_TARGET_BLOCK_BYTES = 2 * 1024 * 1024   # ~2 MiB per x block (1-4 MiB sweet spot)
_SPLIT_MIN_ROWS = 512                   # only split a single block if halves stay >=512 rows


def _vmem_capacity_bytes() -> int:
    """Physical VMEM per TensorCore; conservative fallback = 64 MiB (v7x)."""
    try:
        cap = int(pltpu.get_tpu_info().vmem_capacity_bytes)
        if cap > 0:
            return cap
    except Exception:
        pass
    return 64 * 1024 * 1024


def _choose_tok_block(T: int, D: int, itemsize: int, vmem_cap: int) -> int:
    # Sublane packing: f32 -> 8 rows, bf16 -> 16 rows, int8/fp8 -> 32 rows.
    row_align = max(8, 32 // itemsize)
    row_bytes = D * itemsize
    # Per-row VMEM footprint: 2 in bufs + 2 out bufs (x.dtype) + ~2 f32 working copies.
    per_row_vmem = 4 * row_bytes + 2 * D * 4

    blk = _TARGET_BLOCK_BYTES // max(row_bytes, 1)
    blk = min(blk, (int(vmem_cap * 0.75)) // max(per_row_vmem, 1))
    blk = (blk // row_align) * row_align
    blk = max(blk, row_align)

    if blk >= T:
        # Whole tensor fits in one block. If it is large, split in two so the
        # second TensorCore on v7x has work (token axis is "parallel").
        if T >= 2 * _SPLIT_MIN_ROWS:
            half = -(-((T + 1) // 2) // row_align) * row_align
            if half < T:
                return half
        return T  # full-extent block (allowed even if not a multiple of 8)
    return blk


def rmsnorm_forward(x: jax.Array, gain: jax.Array, eps: float = 1e-5) -> jax.Array:
    """RMSNorm over the last dim. x: (..., D), gain: (D,) -> (..., D) in x.dtype."""
    orig_shape = x.shape
    orig_dtype = x.dtype
    D = gain.shape[0]
    assert orig_shape[-1] == D, (orig_shape, D)

    x2 = x.reshape(-1, D)
    T = x2.shape[0]
    itemsize = jnp.dtype(x2.dtype).itemsize
    gain_bytes = D * jnp.dtype(gain.dtype).itemsize

    vmem_cap = _vmem_capacity_bytes()
    tok_blk = _choose_tok_block(T, D, itemsize, vmem_cap)
    grid = ((T + tok_blk - 1) // tok_blk,)

    # Explicit scoped-VMEM limit: 2x double-buffered x + out blocks, gain, f32 temps,
    # plus 25% headroom; never above ~75% of physical VMEM (v7x only has 64 MiB/TC).
    blk_bytes = tok_blk * D * itemsize
    vmem_needed = 4 * blk_bytes + 2 * gain_bytes + 2 * tok_blk * D * 4
    vmem_limit = int(vmem_needed * 1.25)
    vmem_limit = max(vmem_limit, 4 * 1024 * 1024)
    vmem_limit = min(vmem_limit, int(vmem_cap * 0.75))

    cost = pl.CostEstimate(
        flops=5 * T * D,                                   # square, reduce, 2 muls, add
        transcendentals=T,                                 # one rsqrt per row
        bytes_accessed=2 * T * D * itemsize + gain_bytes,  # read x, write out, read gain
    )

    out_flat = pl.pallas_call(
        functools.partial(_rmsnorm_kernel, eps=eps),
        grid_spec=pltpu.PrefetchScalarGridSpec(
            num_scalar_prefetch=0,
            grid=grid,
            in_specs=[
                pl.BlockSpec((tok_blk, D), lambda i: (i, 0)),  # x block
                pl.BlockSpec((1, D), lambda i: (0, 0)),        # gain (same every step)
            ],
            out_specs=pl.BlockSpec((tok_blk, D), lambda i: (i, 0)),
        ),
        out_shape=jax.ShapeDtypeStruct((T, D), orig_dtype),
        compiler_params=pltpu.CompilerParams(
            dimension_semantics=("parallel",),   # independent token blocks -> 2 TCs on v7x
            vmem_limit_bytes=vmem_limit,
        ),
        cost_estimate=cost,
    )(x2, gain.reshape(1, D))

    return out_flat.reshape(orig_shape)


if __name__ == "__main__":
    d_model = 128
    eps = 1e-5
    batch, seq = 2, 8

    key = jax.random.PRNGKey(0)
    k_g, k_x = jax.random.split(key)

    # Deterministic synthetic parameter (trunc_normal-ish init) and input.
    gain = jnp.clip(jax.random.normal(k_g, (d_model,), dtype=jnp.float32), -2.0, 2.0)
    x = jax.random.normal(k_x, (batch, seq, d_model), dtype=jnp.float32)

    out = rmsnorm_forward(x, gain, eps=eps)
    out = jax.block_until_ready(out)

    # Pure-JAX reference (matches the PyTorch forward).
    x32 = x.astype(jnp.float32)
    rms = jnp.sqrt(jnp.mean(jnp.square(x32), axis=-1, keepdims=True) + eps)
    ref = (gain * (x32 / rms)).astype(x.dtype)

    assert out.shape == (batch, seq, d_model), out.shape
    assert jnp.allclose(out, ref, atol=1e-5, rtol=1e-5), "mismatch vs reference RMSNorm"

    print("KERNEL_OK")
</pallas_src>

<mosaic_0001>
module attributes {stable_mosaic.version = 11 : i64} {
  func.func @_rmsnorm_kernel(%arg0: i32, %arg1: memref<16x128xf32, #tpu.memory_space<vmem>>, %arg2: memref<1x128xf32, #tpu.memory_space<vmem>>, %arg3: memref<16x128xf32, #tpu.memory_space<vmem>>) attributes {dimension_semantics = [#tpu.dimension_semantics<parallel>], iteration_bounds = array<i64: 1>, scalar_prefetch = 0 : i64, scratch_operands = 0 : i64, tpu.core_type = #tpu.core_type<tc>, window_params = [{transform_indices = @transform_0, window_bounds = array<i64: 16, 128>}, {pipeline_mode = #tpu.pipeline_mode<synchronous>, transform_indices = @transform_1, window_bounds = array<i64: 1, 128>}, {transform_indices = @transform_2, window_bounds = array<i64: 16, 128>}]} {
    %c0 = arith.constant 0 : index
    %c0_0 = arith.constant 0 : index
    %0 = vector.load %arg1[%c0, %c0_0] : memref<16x128xf32, #tpu.memory_space<vmem>>, vector<16x128xf32>
    %c0_1 = arith.constant 0 : index
    %c0_2 = arith.constant 0 : index
    %1 = vector.load %arg2[%c0_1, %c0_2] : memref<1x128xf32, #tpu.memory_space<vmem>>, vector<1x128xf32>
    %2 = arith.mulf %0, %0 : vector<16x128xf32>
    %cst = arith.constant dense<0.000000e+00> : vector<16xf32>
    %3 = vector.multi_reduction <add>, %2, %cst [1] : vector<16x128xf32> to vector<16xf32>
    %4 = vector.shape_cast %3 : vector<16xf32> to vector<16x1xf32>
    %cst_3 = arith.constant 1.280000e+02 : f32
    %5 = vector.broadcast %cst_3 : f32 to vector<16x1xf32>
    %6 = arith.divf %4, %5 : vector<16x1xf32>
    %cst_4 = arith.constant 9.99999974E-6 : f32
    %7 = vector.broadcast %cst_4 : f32 to vector<16x1xf32>
    %8 = arith.addf %6, %7 : vector<16x1xf32>
    %9 = math.rsqrt %8 : vector<16x1xf32>
    %10 = vector.broadcast %9 : vector<16x1xf32> to vector<16x128xf32>
    %11 = arith.mulf %0, %10 : vector<16x128xf32>
    %12 = vector.broadcast %1 : vector<1x128xf32> to vector<16x128xf32>
    %13 = arith.mulf %11, %12 : vector<16x128xf32>
    %c0_5 = arith.constant 0 : index
    %c0_6 = arith.constant 0 : index
    %14 = vector.load %arg3[%c0_5, %c0_6] : memref<16x128xf32, #tpu.memory_space<vmem>>, vector<16x128xf32>
    tpu.vector_store %arg3[%c0_5, %c0_6], %13 {strides = array<i32>} : memref<16x128xf32, #tpu.memory_space<vmem>>, vector<16x128xf32>,
    return
  }
  func.func @transform_0(%arg0: i32) -> (i32, i32) {
    %c0_i32 = arith.constant 0 : i32
    %c0_i32_0 = arith.constant 0 : i32
    return %arg0, %c0_i32 : i32, i32
  }
  func.func @transform_1(%arg0: i32) -> (i32, i32) {
    %c0_i32 = arith.constant 0 : i32
    %c0_i32_0 = arith.constant 0 : i32
    %c0_i32_1 = arith.constant 0 : i32
    return %c0_i32, %c0_i32_0 : i32, i32
  }
  func.func @transform_2(%arg0: i32) -> (i32, i32) {
    %c0_i32 = arith.constant 0 : i32
    %c0_i32_0 = arith.constant 0 : i32
    return %arg0, %c0_i32 : i32, i32
  }
}

</mosaic_0001>

<llo_original>
// kernel: tpu_custom_call.1
$region0: #{tpu_custom_call.1}
  #allocation0 [shape = 'u32[]', space=smem, size = 0x4, offset = 0x4, fixed_abs, tag = 'smem constant byte address 0x4 - core index']
  #allocation1 [shape = 'u32[72,128]{1,0:T(1,128)}', space=vmem, size = 0x9000, scoped, tag = 'internal scratch']
  %s0 = inlined_call_operand.hbm [shape: f32[16,128], index: 0, kind: input, shape index: {}]
  %s1 = inlined_call_operand.hbm [shape: f32[1,128], index: 1, kind: input, shape index: {}]
  %s2 = inlined_call_operand.hbm [shape: f32[16,128], index: 2, kind: output, shape index: {}]
  %s3 = sld [smem:[#allocation0]]
  $region26: #{tpu_custom_call.1} parent=0
    _
  %s5 = ssub.s32 1, %s3
  %s6 = scalar_select 0, %s5, %s3
  $region1: #{tpu_custom_call.1} parent=0
    #allocation2 [shape = 'u8[8192]{0}', space=vmem, size = 0x2000, scoped, tag = 'input window, operand 0, single buffered']
    #allocation3 [shape = 's32[1]{0}', space=sflag, size = 0x4, scoped, tag = 'scoped memory for tpu_custom_call.1']
    #allocation4 [shape = 's32[1]{0}', space=sflag, size = 0x4, scoped, tag = 'scoped memory for tpu_custom_call.1']
    #allocation5 [shape = 'u8[512]{0}', space=vmem, size = 0x400, scoped, tag = 'input window, operand 1, single buffered']
    #allocation6 [shape = 's32[1]{0}', space=sflag, size = 0x4, scoped, tag = 'scoped memory for tpu_custom_call.1']
    #allocation7 [shape = 'u8[8192]{0}', space=vmem, size = 0x2000, scoped, tag = 'output window, operand 0, single buffered']
    %7 = vsyncpa [#allocation3], 0
    %8 = vsyncpa [#allocation6], 0
    %9 = vsyncpa [#allocation4], 0
    // Predicated region
    $region2: #{tpu_custom_call.1} parent=1 // pred_check
      _
    $region3: #{tpu_custom_call.1} parent=1 // pred_check_branch
      %11 = sbr.rel (0) target = $region5
    $region4: #{tpu_custom_call.1} parent=1 // pred_region
      %13 = vsyncadd [#allocation3], 0
      %s14 = sshll.u32 %s0, 4
      %s15 = int_to_ptr.hbm [resolvable:$true] %s14
      %s16 = sshll.u32 [#allocation2], 4
      %s17 = int_to_ptr.vmem [resolvable:$true] %s16
      %22 = dma.hbm_to_vmem [thread:$0]  %s15, 256, %s17, [#allocation3], 128, 128, 8
    $region5: #{tpu_custom_call.1} parent=1 // pred_fallthru
      _
    // Predicated region
    $region6: #{tpu_custom_call.1} parent=1 // pred_check
      _
    $region7: #{tpu_custom_call.1} parent=1 // pred_check_branch
      %24 = sbr.rel (0) target = $region9
    $region8: #{tpu_custom_call.1} parent=1 // pred_region
      %26 = vsyncadd [#allocation6], 0
      %s28 = sshll.u32 %s1, 4
      %s29 = int_to_ptr.hbm [resolvable:$true] %s28
      %s30 = sshll.u32 [#allocation5], 4
      %s31 = int_to_ptr.vmem [resolvable:$true] %s30
      %33 = dma.hbm_to_vmem [thread:$0]  %s29, 16, %s31, [#allocation6]
    $region9: #{tpu_custom_call.1} parent=1 // pred_fallthru
      _
    // Predicated region
    $region10: #{tpu_custom_call.1} parent=1 // pred_check
      _
    $region11: #{tpu_custom_call.1} parent=1 // pred_check_branch
      %35 = sbr.rel (0) target = $region13
    $region12: #{tpu_custom_call.1} parent=1 // pred_region
      %37 = dma.done [#allocation3], 256
    $region13: #{tpu_custom_call.1} parent=1 // pred_fallthru
      _
    // Predicated region
    $region14: #{tpu_custom_call.1} parent=1 // pred_check
      _
    $region15: #{tpu_custom_call.1} parent=1 // pred_check_branch
      %39 = sbr.rel (0) target = $region17
    $region16: #{tpu_custom_call.1} parent=1 // pred_region
      %41 = dma.done [#allocation6], 16
    $region17: #{tpu_custom_call.1} parent=1 // pred_fallthru
      _
    %v42 = vld [vmem:[#allocation2] sm:$0xff]
    %v43 = vld [vmem:[#allocation2 + $0x8] sm:$0xff]
    %v44 = vld [vmem:[#allocation5] sm:$0x1]
    %v45 = vmul.f32 %v42, %v42
    %v46 = vmul.f32 %v43, %v43
    %47 = vadd.xlane.f32.xlu0 %v45
    %v48 = vpop.xlane.xlu0 %47
    %49 = vadd.xlane.f32.xlu0 %v46
    %v50 = vpop.xlane.xlu0 %49
    %v51 = vrcp.pop 128.0
    %v52 = vmul.f32 128.0, %v51
    %v53 = vsub.f32 1.0, %v52
    %v54 = vmul.f32 %v51, %v53
    %v55 = vadd.f32 %v51, %v54
    %vm56 = vweird.f32 %v51
    %v57 = vsel %vm56, %v51, %v55
    %v58 = vmul.f32 %v48, %v57
    %v59 = vmul.f32 %v50, %v57
    %v60 = vadd.f32 %v58, 1e-05
    %v61 = vadd.f32 %v59, 1e-05
    %v62 = vrsqrt.pop %v60
    %v63 = vmul.f32 %v62, %v60
    %v64 = vmul.f32 %v63, %v62
    %v65 = vmul.f32 0.5, %v64
    %v66 = vsub.f32 1.5, %v65
    %v67 = vmul.f32 %v62, %v66
    %vm68 = vweird.f32 %v60
    %vm69 = vweird.f32 %v62
    %vm70 = vmor %vm68, %vm69
    %v71 = vsel %vm70, %v62, %v67
    %v72 = vrsqrt.pop %v61
    %v73 = vmul.f32 %v72, %v61
    %v74 = vmul.f32 %v73, %v72
    %v75 = vmul.f32 0.5, %v74
    %v76 = vsub.f32 1.5, %v75
    %v77 = vmul.f32 %v72, %v76
    %vm78 = vweird.f32 %v61
    %vm79 = vweird.f32 %v72
    %vm80 = vmor %vm78, %vm79
    %v81 = vsel %vm80, %v72, %v77
    %v82 = vmul.f32 %v42, %v71
    %v83 = vmul.f32 %v43, %v81
    %v85 = vperm.slane %v44, 0
    %v87 = vmul.f32 %v82, %v85
    %v88 = vmul.f32 %v83, %v85
    %89 = vst [vmem:[#allocation7] sm:$0xff] %v87
    %90 = vst [vmem:[#allocation7 + $0x8] sm:$0xff] %v88
    // Predicated region
    $region18: #{tpu_custom_call.1} parent=1 // pred_check
      _
    $region19: #{tpu_custom_call.1} parent=1 // pred_check_branch
      %92 = sbr.rel (0) target = $region21
    $region20: #{tpu_custom_call.1} parent=1 // pred_region
      %94 = vsyncadd [#allocation4], 0
      %s95 = sshll.u32 [#allocation7], 4
      %s96 = int_to_ptr.vmem [resolvable:$true] %s95
      %s97 = sshll.u32 %s2, 4
      %s98 = int_to_ptr.hbm [resolvable:$true] %s97
      %103 = dma.vmem_to_hbm [thread:$0]  %s96, 256, %s98, [#allocation4], 128, 128, 8
    $region21: #{tpu_custom_call.1} parent=1 // pred_fallthru
      _
    // Predicated region
    $region22: #{tpu_custom_call.1} parent=1 // pred_check
      _
    $region23: #{tpu_custom_call.1} parent=1 // pred_check_branch
      %105 = sbr.rel (0) target = $region25
    $region24: #{tpu_custom_call.1} parent=1 // pred_region
      %107 = dma.done [#allocation4], 256
    $region25: #{tpu_custom_call.1} parent=1 // pred_fallthru
      _
    %108 = vsyncpa [#allocation3], 1
    %109 = vsyncpa [#allocation6], 1
    %110 = vsyncpa [#allocation4], 1

</llo_original>
